<compile_context>
chip_gen: v7x
topology: tpu7x:2x2x1
jax: 0.10.0
libtpu: 0.0.40
codegen_flags: <defaults>
</compile_context>

<pallas_src>
import jax
import jax.numpy as jnp
from jax.experimental import pallas as pl
from jax.experimental.pallas import tpu as pltpu


def _round_up(x, m):
    return ((x + m - 1) // m) * m


def _binary_discriminator_kernel(x_ref, w1t_ref, b1_ref, w2_ref, b2_ref, o_ref):
    # Layer 1, transposed so the batch sits on the lane axis:
    #   h_t[h, b] = sum_f w1t[h, f] * x[b, f]      (MXU matmul with transposed RHS)
    h_t = jax.lax.dot_general(
        w1t_ref[...], x_ref[...],
        dimension_numbers=(((1,), (1,)), ((), ())),
        preferred_element_type=jnp.float32,
    )
    h_t = jnp.maximum(h_t + b1_ref[...].astype(jnp.float32), 0.0)
    # TODO(synk): nn.Dropout(0.5) is identity in eval mode; training-mode Bernoulli mask + 2x scaling
    #             is not reproduced here (inference-only kernel).
    # Layer 2 on VPU + XLU: out[1, bm] = sum_h h_t * w2 + b2   (avoids an N=1 MXU matmul and the
    # masked [bm, 1] stores it would force).
    out_row = jnp.sum(h_t * w2_ref[...].astype(jnp.float32), axis=0, keepdims=True)
    out_row = out_row + b2_ref[...].astype(jnp.float32)
    o_ref[...] = out_row.astype(o_ref.dtype)   # lane-dense [1, block_m] store


def _choose_block_m(batch):
    target = 1024
    if batch <= target:
        return _round_up(batch, 8)
    n_blocks = -(-batch // target)                     # number of grid steps
    return _round_up(-(-batch // n_blocks), 128)       # lane-dense-friendly tile


def _vmem_limit_bytes(block_m, feature_size, hidden_size, itemsize):
    f_pad = _round_up(feature_size, 128)               # F lane-pads to 128 in VMEM
    h_pad = _round_up(hidden_size, 8)
    bm_pad = _round_up(block_m, 128)
    x_bytes = 2 * block_m * f_pad * itemsize                                   # double-buffered x tile
    out_bytes = 2 * 8 * bm_pad * itemsize                                      # double-buffered [1, bm] row
    par_bytes = 2 * (h_pad * f_pad + 2 * h_pad * 128 + 8 * 128) * itemsize     # w1t, b1, w2, b2
    tmp_bytes = 3 * h_pad * bm_pad * 4                                         # f32 h_t + elementwise temps
    est = x_bytes + out_bytes + par_bytes + tmp_bytes + (8 << 20)              # + headroom
    return int(min(max(est, 16 << 20), 64 << 20))


def binary_discriminator(features, w1, b1, w2, b2, *, block_m=None):
    """features: [B, F]; w1: [F, H]; b1: [1, H] (or [H]); w2: [H, 1]; b2: [1, 1]."""
    B, F = features.shape
    H = w1.shape[1]

    if block_m is None:
        block_m = _choose_block_m(B)
    b_pad = _round_up(B, block_m)
    grid_m = b_pad // block_m
    # Mosaic tiling constraint for the lane-dense output block (and the x tile's sublane dim).
    assert grid_m == 1 or block_m % 128 == 0, "block_m must be a multiple of 128 when tiling the batch"

    if b_pad != B:
        features = jnp.pad(features, ((0, b_pad - B), (0, 0)))

    # Tiny, one-time layout plumbing outside the kernel.
    w1_t = jnp.transpose(w1)            # [H, F]
    b1_col = jnp.reshape(b1, (H, 1))    # [H, 1]
    w2_col = jnp.reshape(w2, (H, 1))    # [H, 1]
    b2_mat = jnp.reshape(b2, (1, 1))    # [1, 1]

    out_row = pl.pallas_call(
        _binary_discriminator_kernel,
        out_shape=jax.ShapeDtypeStruct((1, b_pad), features.dtype),
        grid_spec=pltpu.PrefetchScalarGridSpec(
            num_scalar_prefetch=0,
            grid=(grid_m,),
            in_specs=[
                pl.BlockSpec((block_m, F), lambda i: (i, 0)),   # x tile: streamed, double-buffered
                pl.BlockSpec((H, F), lambda i: (0, 0)),         # W1^T: constant index -> fetched once
                pl.BlockSpec((H, 1), lambda i: (0, 0)),         # b1
                pl.BlockSpec((H, 1), lambda i: (0, 0)),         # W2
                pl.BlockSpec((1, 1), lambda i: (0, 0)),         # b2
            ],
            out_specs=pl.BlockSpec((1, block_m), lambda i: (0, i)),  # lane-dense output row per step
        ),
        compiler_params=pltpu.CompilerParams(
            dimension_semantics=("parallel",),   # shards batch tiles across v7x's 2 TensorCores
            vmem_limit_bytes=_vmem_limit_bytes(block_m, F, H, features.dtype.itemsize),
        ),
    )(features, w1_t, b1_col, w2_col, b2_mat)

    return out_row[0, :B].reshape(B, 1)


def init_params(key, feature_size, hidden_size, dtype=jnp.float32):
    """Match BinaryDiscriminator.__init__: W1~N(0,0.01), b1=0, W2~N(0,0.3), b2=0."""
    k1, k2 = jax.random.split(key)
    # stored as [in, out] (transpose of torch's [out, in]); same iid normal distribution
    w1 = 0.01 * jax.random.normal(k1, (feature_size, hidden_size), dtype)
    b1 = jnp.zeros((1, hidden_size), dtype)
    w2 = 0.3 * jax.random.normal(k2, (hidden_size, 1), dtype)
    b2 = jnp.zeros((1, 1), dtype)
    return w1, b1, w2, b2


def _reference(x, w1, b1, w2, b2):
    return jnp.maximum(x @ w1 + b1, 0.0) @ w2 + b2   # eval-mode dropout == identity


if __name__ == "__main__":
    feature_size = 32
    hidden_size = 64

    key = jax.random.PRNGKey(0)
    k_params, k_x1, k_x2 = jax.random.split(key, 3)
    w1, b1, w2, b2 = init_params(k_params, feature_size, hidden_size)

    # Small-shape check (grid = 1).
    batch = 8
    x = jax.random.normal(k_x1, (batch, feature_size), jnp.float32)
    out = jax.block_until_ready(binary_discriminator(x, w1, b1, w2, b2))
    ref = _reference(x, w1, b1, w2, b2)
    assert out.shape == (batch, 1)
    assert jnp.allclose(out, ref, atol=1e-5, rtol=1e-4)

    # Multi-step grid + batch-padding check (exercises the pipelined / megacore path).
    batch2 = 1100
    x2 = jax.random.normal(k_x2, (batch2, feature_size), jnp.float32)
    out2 = jax.block_until_ready(binary_discriminator(x2, w1, b1, w2, b2))
    ref2 = _reference(x2, w1, b1, w2, b2)
    assert out2.shape == (batch2, 1)
    assert jnp.allclose(out2, ref2, atol=1e-5, rtol=1e-4)

    print("KERNEL_OK")
</pallas_src>

<mosaic_0001>
module attributes {stable_mosaic.version = 11 : i64} {
  func.func @_binary_discriminator_kernel(%arg0: i32, %arg1: memref<8x32xf32, #tpu.memory_space<vmem>>, %arg2: memref<64x32xf32, #tpu.memory_space<vmem>>, %arg3: memref<64x1xf32, #tpu.memory_space<vmem>>, %arg4: memref<64x1xf32, #tpu.memory_space<vmem>>, %arg5: memref<1x1xf32, #tpu.memory_space<vmem>>, %arg6: memref<1x8xf32, #tpu.memory_space<vmem>>) attributes {dimension_semantics = [#tpu.dimension_semantics<parallel>], iteration_bounds = array<i64: 1>, scalar_prefetch = 0 : i64, scratch_operands = 0 : i64, tpu.core_type = #tpu.core_type<tc>, window_params = [{transform_indices = @transform_0, window_bounds = array<i64: 8, 32>}, {pipeline_mode = #tpu.pipeline_mode<synchronous>, transform_indices = @transform_1, window_bounds = array<i64: 64, 32>}, {pipeline_mode = #tpu.pipeline_mode<synchronous>, transform_indices = @transform_2, window_bounds = array<i64: 64, 1>}, {pipeline_mode = #tpu.pipeline_mode<synchronous>, transform_indices = @transform_3, window_bounds = array<i64: 64, 1>}, {pipeline_mode = #tpu.pipeline_mode<synchronous>, transform_indices = @transform_4, window_bounds = array<i64: 1, 1>}, {transform_indices = @transform_5, window_bounds = array<i64: 1, 8>}]} {
    %c0 = arith.constant 0 : index
    %c0_0 = arith.constant 0 : index
    %0 = vector.load %arg2[%c0, %c0_0] : memref<64x32xf32, #tpu.memory_space<vmem>>, vector<64x32xf32>
    %c0_1 = arith.constant 0 : index
    %c0_2 = arith.constant 0 : index
    %1 = vector.load %arg1[%c0_1, %c0_2] : memref<8x32xf32, #tpu.memory_space<vmem>>, vector<8x32xf32>
    %cst = arith.constant dense<0.000000e+00> : vector<64x8xf32>
    %2 = tpu.matmul %0, %1, %cst {dimension_numbers = #tpu.dot_dimension_numbers<[1], [1], [0], [0], [0, 0, 1, 0], [], []>} : vector<64x32xf32>, vector<8x32xf32>, vector<64x8xf32> -> vector<64x8xf32>
    %c0_3 = arith.constant 0 : index
    %c0_4 = arith.constant 0 : index
    %3 = vector.load %arg3[%c0_3, %c0_4] : memref<64x1xf32, #tpu.memory_space<vmem>>, vector<64x1xf32>
    %4 = vector.broadcast %3 : vector<64x1xf32> to vector<64x8xf32>
    %5 = arith.addf %2, %4 : vector<64x8xf32>
    %cst_5 = arith.constant 0.000000e+00 : f32
    %6 = vector.broadcast %cst_5 : f32 to vector<64x8xf32>
    %7 = arith.maximumf %5, %6 : vector<64x8xf32>
    %c0_6 = arith.constant 0 : index
    %c0_7 = arith.constant 0 : index
    %8 = vector.load %arg4[%c0_6, %c0_7] : memref<64x1xf32, #tpu.memory_space<vmem>>, vector<64x1xf32>
    %9 = vector.broadcast %8 : vector<64x1xf32> to vector<64x8xf32>
    %10 = arith.mulf %7, %9 : vector<64x8xf32>
    %cst_8 = arith.constant dense<0.000000e+00> : vector<8xf32>
    %11 = vector.multi_reduction <add>, %10, %cst_8 [0] : vector<64x8xf32> to vector<8xf32>
    %12 = vector.shape_cast %11 : vector<8xf32> to vector<1x8xf32>
    %c0_9 = arith.constant 0 : index
    %c0_10 = arith.constant 0 : index
    %13 = vector.load %arg5[%c0_9, %c0_10] : memref<1x1xf32, #tpu.memory_space<vmem>>, vector<1x1xf32>
    %14 = vector.broadcast %13 : vector<1x1xf32> to vector<1x8xf32>
    %15 = arith.addf %12, %14 : vector<1x8xf32>
    %c0_11 = arith.constant 0 : index
    %c0_12 = arith.constant 0 : index
    %16 = vector.load %arg6[%c0_11, %c0_12] : memref<1x8xf32, #tpu.memory_space<vmem>>, vector<1x8xf32>
    tpu.vector_store %arg6[%c0_11, %c0_12], %15 {strides = array<i32>} : memref<1x8xf32, #tpu.memory_space<vmem>>, vector<1x8xf32>,
    return
  }
  func.func @transform_0(%arg0: i32) -> (i32, i32) {
    %c0_i32 = arith.constant 0 : i32
    %c0_i32_0 = arith.constant 0 : i32
    return %arg0, %c0_i32 : i32, i32
  }
  func.func @transform_1(%arg0: i32) -> (i32, i32) {
    %c0_i32 = arith.constant 0 : i32
    %c0_i32_0 = arith.constant 0 : i32
    %c0_i32_1 = arith.constant 0 : i32
    return %c0_i32, %c0_i32_0 : i32, i32
  }
  func.func @transform_2(%arg0: i32) -> (i32, i32) {
    %c0_i32 = arith.constant 0 : i32
    %c0_i32_0 = arith.constant 0 : i32
    %c0_i32_1 = arith.constant 0 : i32
    return %c0_i32, %c0_i32_0 : i32, i32
  }
  func.func @transform_3(%arg0: i32) -> (i32, i32) {
    %c0_i32 = arith.constant 0 : i32
    %c0_i32_0 = arith.constant 0 : i32
    %c0_i32_1 = arith.constant 0 : i32
    return %c0_i32, %c0_i32_0 : i32, i32
  }
  func.func @transform_4(%arg0: i32) -> (i32, i32) {
    %c0_i32 = arith.constant 0 : i32
    %c0_i32_0 = arith.constant 0 : i32
    %c0_i32_1 = arith.constant 0 : i32
    return %c0_i32, %c0_i32_0 : i32, i32
  }
  func.func @transform_5(%arg0: i32) -> (i32, i32) {
    %c0_i32 = arith.constant 0 : i32
    %c0_i32_0 = arith.constant 0 : i32
    return %c0_i32, %arg0 : i32, i32
  }
}

</mosaic_0001>

<llo_original>
// kernel: tpu_custom_call.1
$region0: #{tpu_custom_call.1}
  #allocation0 [shape = 'u32[]', space=smem, size = 0x4, offset = 0x4, fixed_abs, tag = 'smem constant byte address 0x4 - core index']
  #allocation1 [shape = 'u32[144,128]{1,0:T(1,128)}', space=vmem, size = 0x12000, scoped, tag = 'internal scratch']
  #allocation2 [shape = 'f32[1,1]{1,0:T(1,128)S(1)}', space=vmem, size = 0x200, scoped, tag = 'scoped memory for tpu_custom_call.1']
  %s0 = inlined_call_operand.vmem [shape: f32[8,32], index: 0, kind: input, shape index: {}]
  %s1 = inlined_call_operand.vmem [shape: f32[64,32], index: 1, kind: input, shape index: {}]
  %s2 = inlined_call_operand.vmem [shape: f32[64,1], index: 2, kind: input, shape index: {}]
  %s3 = inlined_call_operand.vmem [shape: f32[64,1], index: 3, kind: input, shape index: {}]
  %s4 = inlined_call_operand.<no memory space> [shape: f32[1,1], index: 4, kind: input, shape index: {}]
  %s5 = inlined_call_operand.hbm [shape: f32[1,8], index: 5, kind: output, shape index: {}]
  %s6 = sld [smem:[#allocation0]]
  $region30: #{tpu_custom_call.1} parent=0
    _
  %s8 = ssub.s32 1, %s6
  %s9 = scalar_select 0, %s8, %s6
  %v10 = vstv %s4
  %11 = vst [vmem:[#allocation2] sm:$0x1] %v10
  $region1: #{tpu_custom_call.1} parent=0
    #allocation3 [shape = 'u8[512]{0}', space=vmem, size = 0x400, scoped, tag = 'output window, operand 0, single buffered']
    #allocation4 [shape = 's32[1]{0}', space=sflag, size = 0x4, scoped, tag = 'scoped memory for tpu_custom_call.1']
    %12 = vsyncpa [#allocation4], 0
    // Predicated region
    $region2: #{tpu_custom_call.1} parent=1 // pred_check
      _
    $region3: #{tpu_custom_call.1} parent=1 // pred_check_branch
      %14 = sbr.rel (0) target = $region5
    $region4: #{tpu_custom_call.1} parent=1 // pred_region
      _
    $region5: #{tpu_custom_call.1} parent=1 // pred_fallthru
      _
    // Predicated region
    $region6: #{tpu_custom_call.1} parent=1 // pred_check
      _
    $region7: #{tpu_custom_call.1} parent=1 // pred_check_branch
      %16 = sbr.rel (0) target = $region9
    $region8: #{tpu_custom_call.1} parent=1 // pred_region
      _
    $region9: #{tpu_custom_call.1} parent=1 // pred_fallthru
      _
    // Predicated region
    $region10: #{tpu_custom_call.1} parent=1 // pred_check
      _
    $region11: #{tpu_custom_call.1} parent=1 // pred_check_branch
      %18 = sbr.rel (0) target = $region13
    $region12: #{tpu_custom_call.1} parent=1 // pred_region
      _
    $region13: #{tpu_custom_call.1} parent=1 // pred_fallthru
      _
    // Predicated region
    $region14: #{tpu_custom_call.1} parent=1 // pred_check
      _
    $region15: #{tpu_custom_call.1} parent=1 // pred_check_branch
      %20 = sbr.rel (0) target = $region17
    $region16: #{tpu_custom_call.1} parent=1 // pred_region
      _
    $region17: #{tpu_custom_call.1} parent=1 // pred_fallthru
      _
    // Predicated region
    $region18: #{tpu_custom_call.1} parent=1 // pred_check
      _
    $region19: #{tpu_custom_call.1} parent=1 // pred_check_branch
      %22 = sbr.rel (0) target = $region21
    $region20: #{tpu_custom_call.1} parent=1 // pred_region
      _
    $region21: #{tpu_custom_call.1} parent=1 // pred_fallthru
      _
    %v23 = vld [vmem:[%s1] sm:$0xff]
    %v24 = vld [vmem:[%s1 + $0x8] sm:$0xff]
    %v25 = vld [vmem:[%s1 + $0x10] sm:$0xff]
    %v26 = vld [vmem:[%s1 + $0x18] sm:$0xff]
    %v27 = vld [vmem:[%s1 + $0x20] sm:$0xff]
    %v28 = vld [vmem:[%s1 + $0x28] sm:$0xff]
    %v29 = vld [vmem:[%s1 + $0x30] sm:$0xff]
    %v30 = vld [vmem:[%s1 + $0x38] sm:$0xff]
    %v31 = vld [vmem:[%s0] sm:$0xff]
    %v32 = vld [vmem:[%s2] sm:$0xff]
    %v33 = vld [vmem:[%s2 + $0x8] sm:$0xff]
    %v34 = vld [vmem:[%s2 + $0x10] sm:$0xff]
    %v35 = vld [vmem:[%s2 + $0x18] sm:$0xff]
    %v36 = vld [vmem:[%s2 + $0x20] sm:$0xff]
    %v37 = vld [vmem:[%s2 + $0x28] sm:$0xff]
    %v38 = vld [vmem:[%s2 + $0x30] sm:$0xff]
    %v39 = vld [vmem:[%s2 + $0x38] sm:$0xff]
    %41 = vset.pattern.permute.xlu0 0
    %42 = vperm.xlu0 %41, %v32
    %v43 = vpop.permute.xlu0 %42
    %46 = vset.pattern.permute.xlu0 0
    %47 = vperm.xlu0 %46, %v33
    %v48 = vpop.permute.xlu0 %47
    %51 = vset.pattern.permute.xlu0 0
    %52 = vperm.xlu0 %51, %v34
    %v53 = vpop.permute.xlu0 %52
    %56 = vset.pattern.permute.xlu0 0
    %57 = vperm.xlu0 %56, %v35
    %v58 = vpop.permute.xlu0 %57
    %61 = vset.pattern.permute.xlu0 0
    %62 = vperm.xlu0 %61, %v36
    %v63 = vpop.permute.xlu0 %62
    %66 = vset.pattern.permute.xlu0 0
    %67 = vperm.xlu0 %66, %v37
    %v68 = vpop.permute.xlu0 %67
    %71 = vset.pattern.permute.xlu0 0
    %72 = vperm.xlu0 %71, %v38
    %v73 = vpop.permute.xlu0 %72
    %76 = vset.pattern.permute.xlu0 0
    %77 = vperm.xlu0 %76, %v39
    %v78 = vpop.permute.xlu0 %77
    %vm80 = vcmask 261120
    %v82 = vsel %vm80, %v23, 0
    %v85 = vsel %vm80, %v24, 0
    %v88 = vsel %vm80, %v25, 0
    %v91 = vsel %vm80, %v26, 0
    %v94 = vsel %vm80, %v27, 0
    %v97 = vsel %vm80, %v28, 0
    %v100 = vsel %vm80, %v29, 0
    %v103 = vsel %vm80, %v30, 0
    %v106 = vsel %vm80, %v31, 0
    %108 = vmatprep.subr.mxu0 0.0
    %109 = vmatpush1.xpose.msra.mxu0 %v106
    %110 = vmatprep.subr.mxu0 0.0
    %111 = vmatpush1.xpose.msra.mxu0 0.0
    %112 = vmatprep.subr.mxu0 0.0
    %113 = vmatpush1.xpose.msra.mxu0 0.0
    %114 = vmatprep.subr.mxu0 0.0
    %115 = vmatpush1.xpose.msra.mxu0 0.0
    %116 = vmatprep.subr.mxu0 0.0
    %117 = vmatpush1.xpose.msra.mxu0 0.0
    %118 = vmatprep.subr.mxu0 0.0
    %119 = vmatpush1.xpose.msra.mxu0 0.0
    %120 = vmatprep.subr.mxu0 0.0
    %121 = vmatpush1.xpose.msra.mxu0 0.0
    %122 = vmatprep.subr.mxu0 0.0
    %123 = vmatpush1.xpose.msra.mxu0 0.0
    %124 = vmatprep.subr.mxu0 0.0
    %125 = vmatpush1.xpose.msra.mxu0 0.0
    %126 = vmatprep.subr.mxu0 0.0
    %127 = vmatpush1.xpose.msra.mxu0 0.0
    %128 = vmatprep.subr.mxu0 0.0
    %129 = vmatpush1.xpose.msra.mxu0 0.0
    %130 = vmatprep.subr.mxu0 0.0
    %131 = vmatpush1.xpose.msra.mxu0 0.0
    %132 = vmatprep.subr.mxu0 0.0
    %133 = vmatpush1.xpose.msra.mxu0 0.0
    %134 = vmatprep.subr.mxu0 0.0
    %135 = vmatpush1.xpose.msra.mxu0 0.0
    %136 = vmatprep.subr.mxu0 0.0
    %137 = vmatpush1.xpose.msra.mxu0 0.0
    %138 = vmatprep.subr.mxu0 0.0
    %139 = vmatpush1.xpose.msra.mxu0 0.0
    %140 = vmatprep.subr.mxu0 0.0
    %141 = vmatpush1.xpose.msra.mxu0 0.0
    %142 = vmatprep.subr.mxu0 0.0
    %143 = vmatpush1.xpose.msra.mxu0 0.0
    %144 = vmatprep.subr.mxu0 0.0
    %145 = vmatpush1.xpose.msra.mxu0 0.0
    %146 = vmatprep.subr.mxu0 0.0
    %147 = vmatpush1.xpose.msra.mxu0 0.0
    %148 = vmatprep.subr.mxu0 0.0
    %149 = vmatpush1.xpose.msra.mxu0 0.0
    %150 = vmatprep.subr.mxu0 0.0
    %151 = vmatpush1.xpose.msra.mxu0 0.0
    %152 = vmatprep.subr.mxu0 0.0
    %153 = vmatpush1.xpose.msra.mxu0 0.0
    %154 = vmatprep.subr.mxu0 0.0
    %155 = vmatpush1.xpose.msra.mxu0 0.0
    %156 = vmatprep.subr.mxu0 0.0
    %157 = vmatpush1.xpose.msra.mxu0 0.0
    %158 = vmatprep.subr.mxu0 0.0
    %159 = vmatpush1.xpose.msra.mxu0 0.0
    %160 = vmatprep.subr.mxu0 0.0
    %161 = vmatpush1.xpose.msra.mxu0 0.0
    %162 = vmatprep.subr.mxu0 0.0
    %163 = vmatpush1.xpose.msra.mxu0 0.0
    %164 = vmatprep.subr.mxu0 0.0
    %165 = vmatpush1.xpose.msra.mxu0 0.0
    %166 = vmatprep.subr.mxu0 0.0
    %167 = vmatpush1.xpose.msra.mxu0 0.0
    %168 = vmatprep.subr.mxu0 0.0
    %169 = vmatpush1.xpose.msra.mxu0 0.0
    %170 = vmatprep.subr.mxu0 0.0
    %171 = vmatpush1.xpose.msra.mxu0 0.0
    %172 = vmatprep.mubr.f32.mxu0 0.0
    %173 = vmatmul.mubr.f32.gmra.mrb[0].mxu0 %v82
    %v174 = vpop.f32.mrb[0].mxu0
    %v175 = vadd.f32 %v43, %v174
    %v176 = vpop.f32.mrb[0].mxu0
    %177 = vmatprep.mubr.f32.mxu0 0.0
    %178 = vmatmul.mubr.f32.gmra.mrb[0].mxu0 %v85
    %v179 = vpop.f32.mrb[0].mxu0
    %v180 = vadd.f32 %v48, %v179
    %v181 = vpop.f32.mrb[0].mxu0
    %182 = vmatprep.mubr.f32.mxu0 0.0
    %183 = vmatmul.mubr.f32.gmra.mrb[0].mxu0 %v88
    %v184 = vpop.f32.mrb[0].mxu0
    %v185 = vadd.f32 %v53, %v184
    %v186 = vpop.f32.mrb[0].mxu0
    %187 = vmatprep.mubr.f32.mxu0 0.0
    %188 = vmatmul.mubr.f32.gmra.mrb[0].mxu0 %v91
    %v189 = vpop.f32.mrb[0].mxu0
    %v190 = vadd.f32 %v58, %v189
    %v191 = vpop.f32.mrb[0].mxu0
    %192 = vmatprep.mubr.f32.mxu0 0.0
    %193 = vmatmul.mubr.f32.gmra.mrb[0].mxu0 %v94
    %v194 = vpop.f32.mrb[0].mxu0
    %v195 = vadd.f32 %v63, %v194
    %v196 = vpop.f32.mrb[0].mxu0
    %197 = vmatprep.mubr.f32.mxu0 0.0
    %198 = vmatmul.mubr.f32.gmra.mrb[0].mxu0 %v97
    %v199 = vpop.f32.mrb[0].mxu0
    %v200 = vadd.f32 %v68, %v199
    %v201 = vpop.f32.mrb[0].mxu0
    %202 = vmatprep.mubr.f32.mxu0 0.0
    %203 = vmatmul.mubr.f32.gmra.mrb[0].mxu0 %v100
    %v204 = vpop.f32.mrb[0].mxu0
    %v205 = vadd.f32 %v73, %v204
    %v206 = vpop.f32.mrb[0].mxu0
    %207 = vmatprep.mubr.f32.mxu0 0.0
    %208 = vmatmul.mubr.f32.gmra.mrb[0].mxu0 %v103
    %v209 = vpop.f32.mrb[0].mxu0
    %v210 = vadd.f32 %v78, %v209
    %v211 = vpop.f32.mrb[0].mxu0
    %212 = vdwg.mxu0
    %v213 = vmax.f32 %v175, 0.0
    %v214 = vmax.f32 %v180, 0.0
    %v215 = vmax.f32 %v185, 0.0
    %v216 = vmax.f32 %v190, 0.0
    %v217 = vmax.f32 %v195, 0.0
    %v218 = vmax.f32 %v200, 0.0
    %v219 = vmax.f32 %v205, 0.0
    %v220 = vmax.f32 %v210, 0.0
    %v221 = vld [vmem:[%s3] sm:$0xff]
    %v222 = vld [vmem:[%s3 + $0x8] sm:$0xff]
    %v223 = vld [vmem:[%s3 + $0x10] sm:$0xff]
    %v224 = vld [vmem:[%s3 + $0x18] sm:$0xff]
    %v225 = vld [vmem:[%s3 + $0x20] sm:$0xff]
    %v226 = vld [vmem:[%s3 + $0x28] sm:$0xff]
    %v227 = vld [vmem:[%s3 + $0x30] sm:$0xff]
    %v228 = vld [vmem:[%s3 + $0x38] sm:$0xff]
    %230 = vset.pattern.permute.xlu0 0
    %231 = vperm.xlu0 %230, %v221
    %v232 = vpop.permute.xlu0 %231
    %235 = vset.pattern.permute.xlu0 0
    %236 = vperm.xlu0 %235, %v222
    %v237 = vpop.permute.xlu0 %236
    %240 = vset.pattern.permute.xlu0 0
    %241 = vperm.xlu0 %240, %v223
    %v242 = vpop.permute.xlu0 %241
    %245 = vset.pattern.permute.xlu0 0
    %246 = vperm.xlu0 %245, %v224
    %v247 = vpop.permute.xlu0 %246
    %250 = vset.pattern.permute.xlu0 0
    %251 = vperm.xlu0 %250, %v225
    %v252 = vpop.permute.xlu0 %251
    %255 = vset.pattern.permute.xlu0 0
    %256 = vperm.xlu0 %255, %v226
    %v257 = vpop.permute.xlu0 %256
    %260 = vset.pattern.permute.xlu0 0
    %261 = vperm.xlu0 %260, %v227
    %v262 = vpop.permute.xlu0 %261
    %265 = vset.pattern.permute.xlu0 0
    %266 = vperm.xlu0 %265, %v228
    %v267 = vpop.permute.xlu0 %266
    %v269 = vmul.f32 %v213, %v232
    %v270 = vmul.f32 %v214, %v237
    %v271 = vmul.f32 %v215, %v242
    %v272 = vmul.f32 %v216, %v247
    %v273 = vmul.f32 %v217, %v252
    %v274 = vmul.f32 %v218, %v257
    %v275 = vmul.f32 %v219, %v262
    %v276 = vmul.f32 %v220, %v267
    %vm277 = vcmask 64512
    %v278 = vsel %vm277, %v269, 0.0
    %v279 = vsel %vm277, %v270, 0.0
    %v280 = vadd.f32 %v278, %v279
    %v281 = vsel %vm277, %v271, 0.0
    %v282 = vadd.f32 %v280, %v281
    %v283 = vsel %vm277, %v272, 0.0
    %v284 = vadd.f32 %v282, %v283
    %v285 = vsel %vm277, %v273, 0.0
    %v286 = vadd.f32 %v284, %v285
    %v287 = vsel %vm277, %v274, 0.0
    %v288 = vadd.f32 %v286, %v287
    %v289 = vsel %vm277, %v275, 0.0
    %v290 = vadd.f32 %v288, %v289
    %v291 = vsel %vm277, %v276, 0.0
    %v292 = vadd.f32 %v290, %v291
    %v293 = vrot.slane %v292, 4
    %v294 = vadd.f32 %v292, %v293
    %v295 = vrot.slane %v294, 2
    %v296 = vadd.f32 %v294, %v295
    %v297 = vrot.slane %v296, 1
    %v298 = vadd.f32 %v296, %v297
    %v299 = vld [vmem:[#allocation2] sm:$0x1]
    %301 = vset.pattern.permute.xlu0 0
    %302 = vperm.xlu0 %301, %v299
    %v303 = vpop.permute.xlu0 %302
    %v305 = vlaneseq
    %v306 = vshrl.u32 %v305, 7
    %v307 = vsub.s32 0, %v306
    %v308 = vrot.slane %v303, %v307
    %v309 = vadd.f32 %v298, %v308
    %vm310 = vcmask 57344
    %311 = vst.msk [vmem:[#allocation3] sm:$0x1] %vm310, %v309
    // Predicated region
    $region22: #{tpu_custom_call.1} parent=1 // pred_check
      _
    $region23: #{tpu_custom_call.1} parent=1 // pred_check_branch
      %313 = sbr.rel (0) target = $region25
    $region24: #{tpu_custom_call.1} parent=1 // pred_region
      %s315 = ssub.s32 16, 16
      %316 = vsyncadd [#allocation4], %s315
      %s318 = sshll.u32 [#allocation3], 4
      %s319 = int_to_ptr.vmem [resolvable:$true] %s318
      %321 = dma.vmem_to_hbm [thread:$0]  %s319, 16, %s5, [#allocation4]
    $region25: #{tpu_custom_call.1} parent=1 // pred_fallthru
      _
    // Predicated region
    $region26: #{tpu_custom_call.1} parent=1 // pred_check
      _
    $region27: #{tpu_custom_call.1} parent=1 // pred_check_branch
      %323 = sbr.rel (0) target = $region29
    $region28: #{tpu_custom_call.1} parent=1 // pred_region
      %324 = dma.done [#allocation4], 16
    $region29: #{tpu_custom_call.1} parent=1 // pred_fallthru
      _
    %325 = vsyncpa [#allocation4], 1

</llo_original>
